<compile_context>
chip_gen: v5e
topology: v5e:2x2
jax: 0.10.0
libtpu: 0.0.40
codegen_flags: <defaults>
</compile_context>

<pallas_src>
import math
from functools import partial

import jax
import jax.numpy as jnp
import numpy as np
from jax import lax
from jax.experimental import pallas as pl
from jax.experimental.pallas import tpu as pltpu


# ----------------------------------------------------------------------------
# helpers
# ----------------------------------------------------------------------------
def _round_up(x, m):
    return (x + m - 1) // m * m


def _vmem_limit_bytes():
    """~75% of per-core VMEM: <=48 MiB on v7x, ~96 MiB on v5e/v6e."""
    try:
        cap = getattr(pltpu.get_tpu_info(), "vmem_capacity_bytes", None)
        if cap:
            return int(cap) * 3 // 4
    except Exception:
        pass
    return 48 * 1024 * 1024


_VMEM_LIMIT = _vmem_limit_bytes()


# ----------------------------------------------------------------------------
# 1 & 3) Conv1D(rf=1) == linear over last dim: tiled matmul + bias kernel
# ----------------------------------------------------------------------------
def _linear_bias_kernel(x_ref, w_ref, b_ref, o_ref):
    acc = jnp.dot(x_ref[...], w_ref[...], preferred_element_type=jnp.float32)
    o_ref[...] = (acc + b_ref[...]).astype(o_ref.dtype)


def linear(x2d, w, b, *, block_m=256, block_n=512,
           compute_dtype=jnp.bfloat16, out_dtype=None):
    """y = x2d @ w + b.  x2d: (M, K), w: (K, N), b: (1, N)."""
    M, K = x2d.shape
    N = w.shape[1]
    out_dtype = out_dtype if out_dtype is not None else x2d.dtype

    # Legal tile sizes: full-dim blocks for small dims, (8,128)-aligned otherwise.
    if M <= block_m:
        bm, m_pad = M, M
    else:
        bm, m_pad = block_m, _round_up(M, block_m)
    if N <= block_n:
        bn, n_pad = N, N
    else:
        bn, n_pad = block_n, _round_up(N, block_n)

    x_c = x2d.astype(compute_dtype)
    w_c = w.astype(compute_dtype)
    b_c = b.astype(jnp.float32)                 # bias added to the f32 accumulator
    if m_pad != M:
        x_c = jnp.pad(x_c, ((0, m_pad - M), (0, 0)))
    if n_pad != N:
        w_c = jnp.pad(w_c, ((0, 0), (0, n_pad - N)))
        b_c = jnp.pad(b_c, ((0, 0), (0, n_pad - N)))

    # TODO(synk): tile K with an f32 accumulator scratch for very large widths.
    out = pl.pallas_call(
        _linear_bias_kernel,
        out_shape=jax.ShapeDtypeStruct((m_pad, n_pad), out_dtype),
        grid_spec=pltpu.PrefetchScalarGridSpec(
            num_scalar_prefetch=0,
            grid=(m_pad // bm, n_pad // bn),
            in_specs=[
                pl.BlockSpec((bm, K), lambda i, j: (i, 0)),   # activations: rows tiled
                pl.BlockSpec((K, bn), lambda i, j: (0, j)),   # weight: cols tiled
                pl.BlockSpec((1, bn), lambda i, j: (0, j)),   # bias:   cols tiled
            ],
            out_specs=pl.BlockSpec((bm, bn), lambda i, j: (i, j)),
        ),
        compiler_params=pltpu.CompilerParams(
            dimension_semantics=("parallel", "parallel"),
            vmem_limit_bytes=_VMEM_LIMIT),
    )(x_c, w_c, b_c)

    if m_pad != M or n_pad != N:
        out = out[:M, :N]
    return out


# ----------------------------------------------------------------------------
# 2) flash-style attention: online softmax, block skipping, in-kernel masking
# ----------------------------------------------------------------------------
def _flash_attn_kernel(lens_ref, q_ref, k_ref, v_ref, o_ref,
                       m_sc, l_sc, acc_sc, *, block_q, block_k):
    b = pl.program_id(0)
    qi = pl.program_id(2)
    ki = pl.program_id(3)
    seq_len = lens_ref[b]

    @pl.when(ki == 0)
    def _():
        m_sc[...] = jnp.full_like(m_sc, -jnp.inf)
        l_sc[...] = jnp.zeros_like(l_sc)
        acc_sc[...] = jnp.zeros_like(acc_sc)

    # Skip KV tiles entirely above the causal diagonal or entirely past the
    # sequence end. Their DMA is suppressed too (clamped K/V index_map keeps
    # the same block index on skipped steps -> no re-fetch).
    should_compute = jnp.logical_and(
        ki * block_k <= qi * block_q + (block_q - 1),
        ki * block_k < seq_len)

    @pl.when(should_compute)
    def _():
        q = q_ref[...]                           # (bq, hd) bf16 (scale pre-folded)
        k = k_ref[...]                           # (bk, hd) bf16
        v = v_ref[...]                           # (bk, hd) bf16

        # QK^T on the MXU, contracting the head dim (no K-transpose copy)
        s = lax.dot_general(q, k, (((1,), (1,)), ((), ())),
                            preferred_element_type=jnp.float32)      # (bq, bk) f32

        # causal + key-padding mask from cheap (bq,1)/(1,bk) iotas
        q_pos = qi * block_q + lax.broadcasted_iota(jnp.int32, (block_q, 1), 0)
        k_pos = ki * block_k + lax.broadcasted_iota(jnp.int32, (1, block_k), 1)
        keep = (k_pos <= q_pos) & (k_pos < seq_len)
        # exact -1e9 fill reproduces the reference "w*b + -1e9*(1-b)" semantics
        s = jnp.where(keep, s, -1.0e9)

        # online softmax accumulation (all statistics in f32)
        m_prev = m_sc[...]
        m_new = jnp.maximum(m_prev, s.max(axis=-1, keepdims=True))
        alpha = jnp.exp(m_prev - m_new)
        p = jnp.exp(s - m_new)
        l_sc[...] = alpha * l_sc[...] + p.sum(axis=-1, keepdims=True)
        acc_sc[...] = alpha * acc_sc[...] + jnp.dot(
            p.astype(v.dtype), v, preferred_element_type=jnp.float32)
        m_sc[...] = m_new

    @pl.when(ki == pl.num_programs(3) - 1)
    def _():
        # exact reciprocal: runs once per q tile, negligible cost
        o_ref[...] = (acc_sc[...] * pl.reciprocal(l_sc[...])).astype(o_ref.dtype)


def flash_attention(q, k, v, lens, *, block_q=256, block_k=256, out_dtype=None):
    """q, k, v: (B, H, T, hd); lens: (B,) int32 valid key-prefix lengths.

    Defaults target v6e/v7x (256-wide MXU); pass block_k=128 on v5e.
    """
    B, H, T, hd = q.shape
    out_dtype = out_dtype if out_dtype is not None else q.dtype

    # Legal tile sizes (multiple of 8 or full-dim); pad T so the grid is exact.
    bq = min(block_q, _round_up(T, 8))
    bk = min(block_k, _round_up(T, 8))
    t_pad = _round_up(T, math.lcm(bq, bk))
    if t_pad != T:
        pad = ((0, 0), (0, 0), (0, t_pad - T), (0, 0))
        q, k, v = jnp.pad(q, pad), jnp.pad(k, pad), jnp.pad(v, pad)

    def q_map(b, h, i, j, lens_ref):
        return (b, h, i, 0)

    def kv_map(b, h, i, j, lens_ref):
        # Clamp to the last KV block this (q-tile, sequence) actually needs so
        # the pipeline stops DMA-ing unused tiles (repeat index => no re-fetch).
        last_causal = (i * bq + (bq - 1)) // bk
        last_valid = jnp.maximum(lens_ref[b] - 1, 0) // bk
        return (b, h, jnp.minimum(j, jnp.minimum(last_causal, last_valid)), 0)

    kernel = partial(_flash_attn_kernel, block_q=bq, block_k=bk)
    out = pl.pallas_call(
        kernel,
        out_shape=jax.ShapeDtypeStruct((B, H, t_pad, hd), out_dtype),
        grid_spec=pltpu.PrefetchScalarGridSpec(
            num_scalar_prefetch=1,                       # lens -> SMEM
            grid=(B, H, t_pad // bq, t_pad // bk),
            in_specs=[
                pl.BlockSpec((None, None, bq, hd), q_map),    # q
                pl.BlockSpec((None, None, bk, hd), kv_map),   # k
                pl.BlockSpec((None, None, bk, hd), kv_map),   # v
            ],
            out_specs=pl.BlockSpec((None, None, bq, hd), q_map),
            scratch_shapes=[
                pltpu.VMEM((bq, 1), jnp.float32),    # running max m
                pltpu.VMEM((bq, 1), jnp.float32),    # running denom l
                pltpu.VMEM((bq, hd), jnp.float32),   # output accumulator
            ],
        ),
        compiler_params=pltpu.CompilerParams(
            dimension_semantics=("parallel", "parallel", "parallel", "arbitrary"),
            vmem_limit_bytes=_VMEM_LIMIT),
    )(lens, q, k, v)

    if t_pad != T:
        out = out[:, :, :T, :]
    return out


# ----------------------------------------------------------------------------
# full Attention.forward
# ----------------------------------------------------------------------------
def prepare_attention_params(params, *, nx, n_head, scale):
    """One-time parameter prep: fold 1/sqrt(head_dim) into the q columns of c_attn."""
    wqkv, bqkv, wproj, bproj = params
    if scale:
        inv = 1.0 / math.sqrt(nx // n_head)
        wqkv = wqkv.at[:, :nx].multiply(inv)
        bqkv = bqkv.at[:, :nx].multiply(inv)
    return wqkv, bqkv, wproj, bproj


def attention_forward(x, sequence_mask, params, *, n_head, n_ctx,
                      compute_dtype=jnp.bfloat16, block_q=256, block_k=256):
    """x: (B, T, nx) float32; sequence_mask: (B, T) {0,1} prefix padding mask or None.

    `params` must already be scale-folded via prepare_attention_params (done once,
    outside the forward, so no extra elementwise pass over the weights per call).
    """
    B, T, nx = x.shape
    assert nx % n_head == 0 and T <= n_ctx
    hd = nx // n_head
    wqkv, bqkv, wproj, bproj = params

    # 1) c_attn: fused qkv projection (bf16 MXU, f32 accumulate), tiled over (M, N)
    qkv = linear(x.reshape(B * T, nx), wqkv, bqkv,
                 compute_dtype=compute_dtype, out_dtype=compute_dtype)   # (B*T, 3nx)

    # split_heads (layout glue)
    # TODO(synk): for hd >= 128, read q/k/v tiles straight from the contiguous
    # (B, T, 3, H, hd) layout and write the flash output as (B, T, H, hd) to drop
    # these two HBM round-trips; at hd=8 the strided per-row DMA is too fine-grained.
    qkv = qkv.reshape(B, T, 3, n_head, hd).transpose(2, 0, 3, 1, 4)
    q, k, v = qkv[0], qkv[1], qkv[2]                               # each (B, H, T, hd)

    # sequence_mask in this model is a key-padding (prefix) mask -> per-batch lengths
    if sequence_mask is None:
        lens = jnp.full((B,), T, dtype=jnp.int32)
    else:
        lens = jnp.sum(sequence_mask.astype(jnp.int32), axis=-1).astype(jnp.int32)

    # 2) flash attention with causal + padding block skipping
    a = flash_attention(q, k, v, lens, block_q=block_q, block_k=block_k)

    # merge_heads -> lane-dense (B*T, nx) for c_proj
    a = a.transpose(0, 2, 1, 3).reshape(B * T, nx)

    # 3) c_proj
    out = linear(a, wproj, bproj, compute_dtype=compute_dtype, out_dtype=x.dtype)
    return out.reshape(B, T, nx)


# ----------------------------------------------------------------------------
# pure-JAX reference mirroring the PyTorch module (eval mode)
# ----------------------------------------------------------------------------
def reference_forward(x, sequence_mask, params, *, n_head, scale):
    B, T, nx = x.shape
    hd = nx // n_head
    wqkv, bqkv, wproj, bproj = params
    qkv = x @ wqkv + bqkv[0]
    q, k, v = jnp.split(qkv, 3, axis=-1)
    q = q.reshape(B, T, n_head, hd).transpose(0, 2, 1, 3)   # (B,H,T,hd)
    k = k.reshape(B, T, n_head, hd).transpose(0, 2, 3, 1)   # (B,H,hd,T)
    v = v.reshape(B, T, n_head, hd).transpose(0, 2, 1, 3)   # (B,H,T,hd)
    w = q @ k
    if scale:
        w = w / math.sqrt(hd)
    causal = jnp.tril(jnp.ones((T, T), jnp.float32))
    m = causal[None, None] * sequence_mask.astype(jnp.float32)[:, None, None, :]
    w = w * m + (-1.0e9) * (1.0 - m)
    p = jax.nn.softmax(w, axis=-1)
    a = (p @ v).transpose(0, 2, 1, 3).reshape(B, T, nx)
    return a @ wproj + bproj[0]


if __name__ == "__main__":
    # Small config consistent with the module: nx % nH == 0, T <= n_ctx
    B, T, nx, n_head, n_ctx = 2, 8, 32, 4, 8
    scale = True

    key = jax.random.PRNGKey(0)
    kx, kw1, kw2 = jax.random.split(key, 3)

    x = jax.random.normal(kx, (B, T, nx), dtype=jnp.float32)
    # sequence lengths 8 and 5 -> key-padding (prefix) mask
    lens = jnp.array([8, 5])
    sequence_mask = (jnp.arange(T)[None, :] < lens[:, None]).astype(jnp.float32)

    # Deterministic parameter init mirroring Conv1D.__init__ (normal std=0.02, zero bias)
    wqkv = 0.02 * jax.random.normal(kw1, (nx, 3 * nx), dtype=jnp.float32)
    bqkv = jnp.zeros((1, 3 * nx), dtype=jnp.float32)
    wproj = 0.02 * jax.random.normal(kw2, (nx, nx), dtype=jnp.float32)
    bproj = jnp.zeros((1, nx), dtype=jnp.float32)
    raw_params = (wqkv, bqkv, wproj, bproj)

    # one-time parameter prep (folds the 1/sqrt(head_dim) score scale)
    params = prepare_attention_params(raw_params, nx=nx, n_head=n_head, scale=scale)

    out = attention_forward(x, sequence_mask, params, n_head=n_head, n_ctx=n_ctx)
    out = jax.block_until_ready(out)

    ref = reference_forward(x, sequence_mask, raw_params, n_head=n_head, scale=scale)
    # bf16 matmuls (f32 accumulation) vs f32 reference -> relaxed tolerance
    np.testing.assert_allclose(np.asarray(out), np.asarray(ref), rtol=2e-2, atol=2e-3)

    print("KERNEL_OK")
</pallas_src>

<mosaic_0001>
module attributes {stable_mosaic.version = 11 : i64} {
  func.func @_linear_bias_kernel(%arg0: i32, %arg1: i32, %arg2: memref<16x32xbf16, #tpu.memory_space<vmem>>, %arg3: memref<32x96xbf16, #tpu.memory_space<vmem>>, %arg4: memref<1x96xf32, #tpu.memory_space<vmem>>, %arg5: memref<16x96xbf16, #tpu.memory_space<vmem>>) attributes {dimension_semantics = [#tpu.dimension_semantics<parallel>, #tpu.dimension_semantics<parallel>], iteration_bounds = array<i64: 1, 1>, scalar_prefetch = 0 : i64, scratch_operands = 0 : i64, tpu.core_type = #tpu.core_type<tc>, window_params = [{transform_indices = @transform_0, window_bounds = array<i64: 16, 32>}, {transform_indices = @transform_1, window_bounds = array<i64: 32, 96>}, {transform_indices = @transform_2, window_bounds = array<i64: 1, 96>}, {transform_indices = @transform_3, window_bounds = array<i64: 16, 96>}]} {
    %c0 = arith.constant 0 : index
    %c0_0 = arith.constant 0 : index
    %0 = vector.load %arg2[%c0, %c0_0] : memref<16x32xbf16, #tpu.memory_space<vmem>>, vector<16x32xbf16>
    %c0_1 = arith.constant 0 : index
    %c0_2 = arith.constant 0 : index
    %1 = vector.load %arg3[%c0_1, %c0_2] : memref<32x96xbf16, #tpu.memory_space<vmem>>, vector<32x96xbf16>
    %cst = arith.constant dense<0.000000e+00> : vector<16x96xf32>
    %2 = tpu.matmul %0, %1, %cst {dimension_numbers = #tpu.dot_dimension_numbers<[1], [0], [0], [1], [0, 0, 1, 1], [], []>} : vector<16x32xbf16>, vector<32x96xbf16>, vector<16x96xf32> -> vector<16x96xf32>
    %c0_3 = arith.constant 0 : index
    %c0_4 = arith.constant 0 : index
    %3 = vector.load %arg4[%c0_3, %c0_4] : memref<1x96xf32, #tpu.memory_space<vmem>>, vector<1x96xf32>
    %4 = vector.broadcast %3 : vector<1x96xf32> to vector<16x96xf32>
    %5 = arith.addf %2, %4 : vector<16x96xf32>
    %6 = arith.truncf %5 : vector<16x96xf32> to vector<16x96xbf16>
    %c0_5 = arith.constant 0 : index
    %c0_6 = arith.constant 0 : index
    %7 = vector.load %arg5[%c0_5, %c0_6] : memref<16x96xbf16, #tpu.memory_space<vmem>>, vector<16x96xbf16>
    tpu.vector_store %arg5[%c0_5, %c0_6], %6 {strides = array<i32>} : memref<16x96xbf16, #tpu.memory_space<vmem>>, vector<16x96xbf16>,
    return
  }
  func.func @transform_0(%arg0: i32, %arg1: i32) -> (i32, i32) {
    %c0_i32 = arith.constant 0 : i32
    %c0_i32_0 = arith.constant 0 : i32
    return %arg0, %c0_i32 : i32, i32
  }
  func.func @transform_1(%arg0: i32, %arg1: i32) -> (i32, i32) {
    %c0_i32 = arith.constant 0 : i32
    %c0_i32_0 = arith.constant 0 : i32
    return %c0_i32, %arg1 : i32, i32
  }
  func.func @transform_2(%arg0: i32, %arg1: i32) -> (i32, i32) {
    %c0_i32 = arith.constant 0 : i32
    %c0_i32_0 = arith.constant 0 : i32
    return %c0_i32, %arg1 : i32, i32
  }
  func.func @transform_3(%arg0: i32, %arg1: i32) -> (i32, i32) {
    %c0_i32 = arith.constant 0 : i32
    return %arg0, %arg1 : i32, i32
  }
}

</mosaic_0001>

<llo_original>
// kernel: tpu_custom_call.1
$region0: #{tpu_custom_call.1}
  #allocation0 [shape = 'u32[]', space=smem, size = 0x4, offset = 0x4, fixed_abs, tag = 'smem constant byte address 0x4 - core index']
  #allocation1 [shape = 'u32[72,128]{1,0:T(1,128)}', space=vmem, size = 0x9000, scoped, tag = 'internal scratch']
  %s0 = inlined_call_operand.hbm [shape: bf16[16,32], index: 0, kind: input, shape index: {}]
  %s1 = inlined_call_operand.hbm [shape: bf16[32,96], index: 1, kind: input, shape index: {}]
  %s2 = inlined_call_operand.vmem [shape: f32[1,96], index: 2, kind: input, shape index: {}]
  %s3 = inlined_call_operand.hbm [shape: bf16[16,96], index: 3, kind: output, shape index: {}]
  %s4 = sld [smem:[#allocation0]]
  $region30: #{tpu_custom_call.1} parent=0
    _
  %s6 = ssub.s32 1, %s4
  %s7 = scalar_select 0, %s6, %s4
  $region1: #{tpu_custom_call.1} parent=0
    #allocation2 [shape = 'u8[4096]{0}', space=vmem, size = 0x1000, scoped, tag = 'input window, operand 0, single buffered']
    #allocation3 [shape = 's32[1]{0}', space=sflag, size = 0x4, scoped, tag = 'scoped memory for tpu_custom_call.1']
    #allocation4 [shape = 's32[1]{0}', space=sflag, size = 0x4, scoped, tag = 'scoped memory for tpu_custom_call.1']
    #allocation5 [shape = 'u8[8192]{0}', space=vmem, size = 0x2000, scoped, tag = 'input window, operand 1, single buffered']
    #allocation6 [shape = 's32[1]{0}', space=sflag, size = 0x4, scoped, tag = 'scoped memory for tpu_custom_call.1']
    #allocation7 [shape = 'u8[4096]{0}', space=vmem, size = 0x1000, scoped, tag = 'output window, operand 0, single buffered']
    %8 = vsyncpa [#allocation3], 0
    %9 = vsyncpa [#allocation6], 0
    %10 = vsyncpa [#allocation4], 0
    // Predicated region
    $region2: #{tpu_custom_call.1} parent=1 // pred_check
      _
    $region3: #{tpu_custom_call.1} parent=1 // pred_check_branch
      %12 = sbr.rel (0) target = $region5
    $region4: #{tpu_custom_call.1} parent=1 // pred_region
      %14 = vsyncadd [#allocation3], 0
      %s15 = sshll.u32 %s0, 4
      %s16 = int_to_ptr.hbm [resolvable:$true] %s15
      %s17 = sshll.u32 [#allocation2], 4
      %s18 = int_to_ptr.vmem [resolvable:$true] %s17
      %23 = dma.hbm_to_vmem [thread:$0]  %s16, 128, %s18, [#allocation3], 64, 64, 4
    $region5: #{tpu_custom_call.1} parent=1 // pred_fallthru
      _
    // Predicated region
    $region6: #{tpu_custom_call.1} parent=1 // pred_check
      _
    $region7: #{tpu_custom_call.1} parent=1 // pred_check_branch
      %25 = sbr.rel (0) target = $region9
    $region8: #{tpu_custom_call.1} parent=1 // pred_region
      %27 = vsyncadd [#allocation6], 0
      %s28 = sshll.u32 %s1, 4
      %s29 = int_to_ptr.hbm [resolvable:$true] %s28
      %s30 = sshll.u32 [#allocation5], 4
      %s31 = int_to_ptr.vmem [resolvable:$true] %s30
      %36 = dma.hbm_to_vmem [thread:$0]  %s29, 256, %s31, [#allocation6], 64, 64, 4
    $region9: #{tpu_custom_call.1} parent=1 // pred_fallthru
      _
    // Predicated region
    $region10: #{tpu_custom_call.1} parent=1 // pred_check
      _
    $region11: #{tpu_custom_call.1} parent=1 // pred_check_branch
      %38 = sbr.rel (0) target = $region13
    $region12: #{tpu_custom_call.1} parent=1 // pred_region
      _
    $region13: #{tpu_custom_call.1} parent=1 // pred_fallthru
      _
    // Predicated region
    $region14: #{tpu_custom_call.1} parent=1 // pred_check
      _
    $region15: #{tpu_custom_call.1} parent=1 // pred_check_branch
      %40 = sbr.rel (0) target = $region17
    $region16: #{tpu_custom_call.1} parent=1 // pred_region
      %42 = dma.done [#allocation3], 128
    $region17: #{tpu_custom_call.1} parent=1 // pred_fallthru
      _
    // Predicated region
    $region18: #{tpu_custom_call.1} parent=1 // pred_check
      _
    $region19: #{tpu_custom_call.1} parent=1 // pred_check_branch
      %44 = sbr.rel (0) target = $region21
    $region20: #{tpu_custom_call.1} parent=1 // pred_region
      %46 = dma.done [#allocation6], 256
    $region21: #{tpu_custom_call.1} parent=1 // pred_fallthru
      _
    %v48 = vld [vmem:[#allocation2] sm:$0xf]
    %v49 = vld [vmem:[#allocation2 + $0x4] sm:$0xf]
    %v50 = vld [vmem:[#allocation5] sm:$0xf]
    %v51 = vld [vmem:[#allocation5 + $0x4] sm:$0xf]
    %v52 = vld [vmem:[#allocation5 + $0x8] sm:$0xf]
    %v53 = vld [vmem:[#allocation5 + $0xc] sm:$0xf]
    %v54 = vld [vmem:[%s2] sm:$0x1]
    %v56 = vperm.slane %v54, 0
    %v60 = vunpack.c.l.b16 %v48
    %v61 = vunpack.c.l.b16 %v49
    %v62 = vpack.c.b16 %v61, %v60
    %v67 = vunpack.c.l.b16 %v50
    %v68 = vunpack.c.l.b16 %v51
    %v69 = vunpack.c.l.b16 %v52
    %v70 = vunpack.c.l.b16 %v53
    %v71 = vpack.c.b16 %v68, %v67
    %v72 = vpack.c.b16 %v70, %v69
    %vm75 = vcmask 261120
    %v77 = vsel %vm75, %v62, 0
    %79 = vmatpush.bf16.msra.mxu0 0
    %80 = vmatpush.bf16.msra.mxu0 0
    %81 = vmatpush.bf16.msra.mxu0 0
    %82 = vmatpush.bf16.msra.mxu0 0
    %83 = vmatpush.bf16.msra.mxu0 0
    %84 = vmatpush.bf16.msra.mxu0 0
    %85 = vmatpush.bf16.msra.mxu0 %v72
    %86 = vmatpush.bf16.msra.mxu0 %v71
    %87 = vmatmul.bf16.gmra.mxu0 %v77
    %v88 = vpop.f32.mrf.mxu0
    %v89 = vadd.f32 %v56, %v88
    %v90 = vpop.f32.mrf.mxu0
    %v91 = vadd.f32 %v56, %v90
    %92 = vdwg.mxu0
    %v93 = vpack.c.bf16 %v89, %v89
    %v94 = vpack.c.bf16 %v91, %v91
    %vm95 = vcmask 781312
    %96 = vst.msk [vmem:[#allocation7] sm:$0xf] %vm95, %v93
    %97 = vst.msk [vmem:[#allocation7 + $0x4] sm:$0xf] %vm95, %v94
    // Predicated region
    $region22: #{tpu_custom_call.1} parent=1 // pred_check
      _
    $region23: #{tpu_custom_call.1} parent=1 // pred_check_branch
      %99 = sbr.rel (0) target = $region25
    $region24: #{tpu_custom_call.1} parent=1 // pred_region
      %101 = vsyncadd [#allocation4], 0
      %s102 = sshll.u32 [#allocation7], 4
      %s103 = int_to_ptr.vmem [resolvable:$true] %s102
      %s104 = sshll.u32 %s3, 4
      %s105 = int_to_ptr.hbm [resolvable:$true] %s104
      %110 = dma.vmem_to_hbm [thread:$0]  %s103, 128, %s105, [#allocation4], 64, 64, 4
    $region25: #{tpu_custom_call.1} parent=1 // pred_fallthru
      _
    // Predicated region
    $region26: #{tpu_custom_call.1} parent=1 // pred_check
      _
    $region27: #{tpu_custom_call.1} parent=1 // pred_check_branch
      %112 = sbr.rel (0) target = $region29
    $region28: #{tpu_custom_call.1} parent=1 // pred_region
      %114 = dma.done [#allocation4], 128
    $region29: #{tpu_custom_call.1} parent=1 // pred_fallthru
      _
    %115 = vsyncpa [#allocation3], 1
    %116 = vsyncpa [#allocation6], 1
    %117 = vsyncpa [#allocation4], 1

</llo_original>
